<compile_context>
chip_gen: v7x
topology: tpu7x:2x2x1
jax: 0.10.0
libtpu: 0.0.40
codegen_flags: <defaults>
</compile_context>

<pallas_src>
import functools

import jax
import jax.numpy as jnp
from jax.experimental import pallas as pl
from jax.experimental.pallas import tpu as pltpu


LANE = 128


def _round_up(x, m):
    return (x + m - 1) // m * m


def mlp_kernel(x_ref, w1_ref, b1_ref, w2_ref, b2_ref, o_ref):
    f32 = jnp.float32
    x = x_ref[...]                                   # (tm, F)
    F = x.shape[1]

    if F <= 32:
        # ---- Layer 1 on the VPU: F unrolled broadcast FMAs ----------------
        # At tiny F the MXU is mostly empty and latency-bound; the VALU slot
        # is idle, so broadcast-FMAs avoid the MXU round trip entirely.
        h = x[:, 0:1].astype(f32) * w1_ref[0:1, :].astype(f32) + b1_ref[...]
        for f in range(1, F):
            h = h + x[:, f:f + 1].astype(f32) * w1_ref[f:f + 1, :].astype(f32)
    else:
        # ---- Layer 1 on the MXU (F padded/large) ---------------------------
        # In-kernel cast of x to the weight dtype (bf16 path) is free VPU
        # filler; accumulation stays f32 via preferred_element_type.
        h = jnp.dot(x.astype(w1_ref.dtype), w1_ref[...],
                    preferred_element_type=f32)
        h = h + b1_ref[...]

    h = jnp.maximum(h, 0.0)                          # ReLU, kept in f32 (v5e-safe)

    # ---- Layer 2 on the MXU -------------------------------------------------
    out = jnp.dot(h.astype(w2_ref.dtype), w2_ref[...],
                  preferred_element_type=f32)
    o_ref[...] = (out + b2_ref[...]).astype(o_ref.dtype)


def prepare_params(w1, b1, w2, b2, *, use_bf16_mxu=False):
    """One-time parameter prep (call OUTSIDE the per-step forward):
    pad the hidden dim to a multiple of 128 lanes (zero W1 columns / b1 /
    W2 rows -- mathematically exact) and optionally pre-cast the matmul
    weights to bf16.  128 (not 256) multiples so v5e isn't over-padded."""
    H = w1.shape[1]
    H_pad = _round_up(H, LANE)
    if H_pad != H:
        w1 = jnp.pad(w1, ((0, 0), (0, H_pad - H)))
        b1 = jnp.pad(b1, ((0, 0), (0, H_pad - H)))
        w2 = jnp.pad(w2, ((0, H_pad - H), (0, 0)))
    if use_bf16_mxu:
        # bf16 MXU inputs: 2-4x MXU throughput + half the weight DMA/VMEM on
        # v6e/v7x.  Biases stay f32; accumulation stays f32 in the kernel.
        w1 = w1.astype(jnp.bfloat16)
        w2 = w2.astype(jnp.bfloat16)
    return w1, b1, w2, b2


@functools.partial(jax.jit, static_argnames=("tm", "single_buffer_weights"))
def net_forward(x, w1p, b1p, w2p, b2p, *, tm=1024, single_buffer_weights=True):
    """Pallas equivalent of Net.forward on pre-padded params (see prepare_params)."""
    B, F = x.shape
    Fw, H_pad = w1p.shape
    O = w2p.shape[1]
    assert Fw == F, "x feature dim must match W1"

    # ---- batch tile: big (amortize ~0.35us/step), but >=2 grid steps when
    # possible so both v7x TensorCores get work under "parallel" semantics.
    tm = max(8, min(tm, _round_up(pl.cdiv(B, 2), 8)))
    tm = min(tm, _round_up(B, 8))
    if w1p.dtype == jnp.bfloat16:
        tm = _round_up(tm, 16)                      # dense bf16 sublane packing

    # ---- explicit VMEM budget (conservative for v7x: 64 MiB physical) -------
    VMEM_BUDGET = 48 * 1024 * 1024
    wbuf = 1 if single_buffer_weights else 2        # resident operand buffers
    weight_vmem = wbuf * sum(int(a.size) * a.dtype.itemsize
                             for a in (w1p, b1p, w2p, b2p))
    if weight_vmem > VMEM_BUDGET:
        # TODO(synk): add a K-tiled ('arbitrary') hidden-dim grid axis with an
        # f32 accumulator scratch (or pre-cast weights to bf16 in
        # prepare_params) when a single layer no longer fits v7x VMEM.
        raise ValueError("resident weights exceed the VMEM budget; "
                         "use bf16 weights or a K-tiled variant")

    def io_vmem(t):  # double-buffered x and out tiles
        return 2 * t * (F * x.dtype.itemsize + O * 4)

    while tm > 8 and weight_vmem + io_vmem(tm) > VMEM_BUDGET:
        tm = max(8, _round_up(tm // 2, 8))

    vmem_limit = int(min(64 * 1024 * 1024,
                         max(32 * 1024 * 1024, 2 * (weight_vmem + io_vmem(tm)))))

    # No batch padding: Pallas clips the partial edge block on load/store.
    grid = (pl.cdiv(B, tm),)

    # Single-buffer the VMEM-resident weights/biases (their block never changes).
    resident = dict(pipeline_mode=pl.Buffered(1)) if single_buffer_weights else {}

    out = pl.pallas_call(
        mlp_kernel,
        out_shape=jax.ShapeDtypeStruct((B, O), jnp.float32),
        grid_spec=pltpu.PrefetchScalarGridSpec(
            num_scalar_prefetch=0,
            grid=grid,
            in_specs=[
                # x: one pipelined batch tile per grid step.
                pl.BlockSpec((tm, F), lambda i: (i, 0)),
                # Weights / biases: constant block -> VMEM-resident.
                pl.BlockSpec((F, H_pad), lambda i: (0, 0), **resident),
                pl.BlockSpec((1, H_pad), lambda i: (0, 0), **resident),
                pl.BlockSpec((H_pad, O), lambda i: (0, 0), **resident),
                pl.BlockSpec((1, O), lambda i: (0, 0), **resident),
            ],
            out_specs=pl.BlockSpec((tm, O), lambda i: (i, 0)),
        ),
        compiler_params=pltpu.CompilerParams(
            dimension_semantics=("parallel",),      # batch tiles independent
            vmem_limit_bytes=vmem_limit,
        ),
    )(x, w1p, b1p, w2p, b2p)
    return out


def init_linear_params(key, fan_in, fan_out):
    """Deterministic init mimicking torch.nn.Linear default:
    U(-1/sqrt(fan_in), 1/sqrt(fan_in)); weight stored as (fan_in, fan_out)."""
    kw, kb = jax.random.split(key)
    bound = 1.0 / jnp.sqrt(float(fan_in))
    w = jax.random.uniform(kw, (fan_in, fan_out), jnp.float32, -bound, bound)
    b = jax.random.uniform(kb, (1, fan_out), jnp.float32, -bound, bound)
    return w, b


def reference_forward(x, w1, b1, w2, b2):
    h = jnp.maximum(x @ w1 + b1, 0.0)
    return h @ w2 + b2


if __name__ == "__main__":
    # Shapes implied by the regression example: Net(n_feature, n_hidden, n_output)
    batch, n_feature, n_hidden, n_output = 64, 4, 32, 1

    key = jax.random.PRNGKey(0)
    kx, k1, k2 = jax.random.split(key, 3)

    x = jax.random.normal(kx, (batch, n_feature), jnp.float32)
    w1, b1 = init_linear_params(k1, n_feature, n_hidden)
    w2, b2 = init_linear_params(k2, n_hidden, n_output)

    params = prepare_params(w1, b1, w2, b2)          # one-time pad (f32 path)
    ref = reference_forward(x, w1, b1, w2, b2)

    def run_and_check(single_buffer):
        out = jax.block_until_ready(
            net_forward(x, *params, single_buffer_weights=single_buffer))
        assert out.shape == (batch, n_output)
        assert jnp.allclose(out, ref, atol=1e-5, rtol=1e-5)
        return out

    try:
        out = run_and_check(True)        # single-buffered resident weights
    except Exception:
        out = run_and_check(False)       # fallback: default double-buffering

    print("KERNEL_OK")
</pallas_src>

<mosaic_0001>
module attributes {stable_mosaic.version = 11 : i64} {
  func.func @mlp_kernel(%arg0: i32, %arg1: memref<32x4xf32, #tpu.memory_space<vmem>>, %arg2: memref<4x128xf32, #tpu.memory_space<vmem>>, %arg3: memref<1x128xf32, #tpu.memory_space<vmem>>, %arg4: memref<128x1xf32, #tpu.memory_space<vmem>>, %arg5: memref<1x1xf32, #tpu.memory_space<vmem>>, %arg6: memref<32x1xf32, #tpu.memory_space<vmem>>) attributes {dimension_semantics = [#tpu.dimension_semantics<parallel>], iteration_bounds = array<i64: 2>, scalar_prefetch = 0 : i64, scratch_operands = 0 : i64, tpu.core_type = #tpu.core_type<tc>, window_params = [{transform_indices = @transform_0, window_bounds = array<i64: 32, 4>}, {pipeline_mode = #tpu.pipeline_mode<synchronous>, transform_indices = @transform_1, window_bounds = array<i64: 4, 128>}, {pipeline_mode = #tpu.pipeline_mode<synchronous>, transform_indices = @transform_2, window_bounds = array<i64: 1, 128>}, {pipeline_mode = #tpu.pipeline_mode<synchronous>, transform_indices = @transform_3, window_bounds = array<i64: 128, 1>}, {pipeline_mode = #tpu.pipeline_mode<synchronous>, transform_indices = @transform_4, window_bounds = array<i64: 1, 1>}, {transform_indices = @transform_5, window_bounds = array<i64: 32, 1>}]} {
    %c0 = arith.constant 0 : index
    %c0_0 = arith.constant 0 : index
    %0 = vector.load %arg1[%c0, %c0_0] : memref<32x4xf32, #tpu.memory_space<vmem>>, vector<32x4xf32>
    %1 = vector.extract_strided_slice %0 {offsets = [0, 0], sizes = [32, 1], strides = [1, 1]} : vector<32x4xf32> to vector<32x1xf32>
    %c0_1 = arith.constant 0 : index
    %c0_2 = arith.constant 0 : index
    %2 = vector.load %arg2[%c0_1, %c0_2] : memref<4x128xf32, #tpu.memory_space<vmem>>, vector<1x128xf32>
    %3 = vector.broadcast %1 : vector<32x1xf32> to vector<32x128xf32>
    %4 = vector.broadcast %2 : vector<1x128xf32> to vector<32x128xf32>
    %5 = arith.mulf %3, %4 : vector<32x128xf32>
    %c0_3 = arith.constant 0 : index
    %c0_4 = arith.constant 0 : index
    %6 = vector.load %arg3[%c0_3, %c0_4] : memref<1x128xf32, #tpu.memory_space<vmem>>, vector<1x128xf32>
    %7 = vector.broadcast %6 : vector<1x128xf32> to vector<32x128xf32>
    %8 = arith.addf %5, %7 : vector<32x128xf32>
    %9 = vector.extract_strided_slice %0 {offsets = [0, 1], sizes = [32, 1], strides = [1, 1]} : vector<32x4xf32> to vector<32x1xf32>
    %c1 = arith.constant 1 : index
    %c0_5 = arith.constant 0 : index
    %10 = vector.load %arg2[%c1, %c0_5] : memref<4x128xf32, #tpu.memory_space<vmem>>, vector<1x128xf32>
    %11 = vector.broadcast %9 : vector<32x1xf32> to vector<32x128xf32>
    %12 = vector.broadcast %10 : vector<1x128xf32> to vector<32x128xf32>
    %13 = arith.mulf %11, %12 : vector<32x128xf32>
    %14 = arith.addf %8, %13 : vector<32x128xf32>
    %15 = vector.extract_strided_slice %0 {offsets = [0, 2], sizes = [32, 1], strides = [1, 1]} : vector<32x4xf32> to vector<32x1xf32>
    %c2 = arith.constant 2 : index
    %c0_6 = arith.constant 0 : index
    %16 = vector.load %arg2[%c2, %c0_6] : memref<4x128xf32, #tpu.memory_space<vmem>>, vector<1x128xf32>
    %17 = vector.broadcast %15 : vector<32x1xf32> to vector<32x128xf32>
    %18 = vector.broadcast %16 : vector<1x128xf32> to vector<32x128xf32>
    %19 = arith.mulf %17, %18 : vector<32x128xf32>
    %20 = arith.addf %14, %19 : vector<32x128xf32>
    %21 = vector.extract_strided_slice %0 {offsets = [0, 3], sizes = [32, 1], strides = [1, 1]} : vector<32x4xf32> to vector<32x1xf32>
    %c3 = arith.constant 3 : index
    %c0_7 = arith.constant 0 : index
    %22 = vector.load %arg2[%c3, %c0_7] : memref<4x128xf32, #tpu.memory_space<vmem>>, vector<1x128xf32>
    %23 = vector.broadcast %21 : vector<32x1xf32> to vector<32x128xf32>
    %24 = vector.broadcast %22 : vector<1x128xf32> to vector<32x128xf32>
    %25 = arith.mulf %23, %24 : vector<32x128xf32>
    %26 = arith.addf %20, %25 : vector<32x128xf32>
    %cst = arith.constant 0.000000e+00 : f32
    %27 = vector.broadcast %cst : f32 to vector<32x128xf32>
    %28 = arith.maximumf %26, %27 : vector<32x128xf32>
    %c0_8 = arith.constant 0 : index
    %c0_9 = arith.constant 0 : index
    %29 = vector.load %arg4[%c0_8, %c0_9] : memref<128x1xf32, #tpu.memory_space<vmem>>, vector<128x1xf32>
    %cst_10 = arith.constant dense<0.000000e+00> : vector<32x1xf32>
    %30 = tpu.matmul %28, %29, %cst_10 {dimension_numbers = #tpu.dot_dimension_numbers<[1], [0], [0], [1], [0, 0, 1, 1], [], []>} : vector<32x128xf32>, vector<128x1xf32>, vector<32x1xf32> -> vector<32x1xf32>
    %c0_11 = arith.constant 0 : index
    %c0_12 = arith.constant 0 : index
    %31 = vector.load %arg5[%c0_11, %c0_12] : memref<1x1xf32, #tpu.memory_space<vmem>>, vector<1x1xf32>
    %32 = vector.broadcast %31 : vector<1x1xf32> to vector<32x1xf32>
    %33 = arith.addf %30, %32 : vector<32x1xf32>
    %c0_13 = arith.constant 0 : index
    %c0_14 = arith.constant 0 : index
    %34 = vector.load %arg6[%c0_13, %c0_14] : memref<32x1xf32, #tpu.memory_space<vmem>>, vector<32x1xf32>
    tpu.vector_store %arg6[%c0_13, %c0_14], %33 {strides = array<i32>} : memref<32x1xf32, #tpu.memory_space<vmem>>, vector<32x1xf32>,
    return
  }
  func.func @transform_0(%arg0: i32) -> (i32, i32) {
    %c0_i32 = arith.constant 0 : i32
    %c0_i32_0 = arith.constant 0 : i32
    return %arg0, %c0_i32 : i32, i32
  }
  func.func @transform_1(%arg0: i32) -> (i32, i32) {
    %c0_i32 = arith.constant 0 : i32
    %c0_i32_0 = arith.constant 0 : i32
    %c0_i32_1 = arith.constant 0 : i32
    return %c0_i32, %c0_i32_0 : i32, i32
  }
  func.func @transform_2(%arg0: i32) -> (i32, i32) {
    %c0_i32 = arith.constant 0 : i32
    %c0_i32_0 = arith.constant 0 : i32
    %c0_i32_1 = arith.constant 0 : i32
    return %c0_i32, %c0_i32_0 : i32, i32
  }
  func.func @transform_3(%arg0: i32) -> (i32, i32) {
    %c0_i32 = arith.constant 0 : i32
    %c0_i32_0 = arith.constant 0 : i32
    %c0_i32_1 = arith.constant 0 : i32
    return %c0_i32, %c0_i32_0 : i32, i32
  }
  func.func @transform_4(%arg0: i32) -> (i32, i32) {
    %c0_i32 = arith.constant 0 : i32
    %c0_i32_0 = arith.constant 0 : i32
    %c0_i32_1 = arith.constant 0 : i32
    return %c0_i32, %c0_i32_0 : i32, i32
  }
  func.func @transform_5(%arg0: i32) -> (i32, i32) {
    %c0_i32 = arith.constant 0 : i32
    %c0_i32_0 = arith.constant 0 : i32
    return %arg0, %c0_i32 : i32, i32
  }
}

module attributes {stable_mosaic.version = 11 : i64} {
  func.func @mlp_kernel(%arg0: i32, %arg1: memref<32x4xf32, #tpu.memory_space<vmem>>, %arg2: memref<4x128xf32, #tpu.memory_space<vmem>>, %arg3: memref<1x128xf32, #tpu.memory_space<vmem>>, %arg4: memref<128x1xf32, #tpu.memory_space<vmem>>, %arg5: memref<1x1xf32, #tpu.memory_space<vmem>>, %arg6: memref<32x1xf32, #tpu.memory_space<vmem>>) attributes {dimension_semantics = [#tpu.dimension_semantics<parallel>], iteration_bounds = array<i64: 2>, scalar_prefetch = 0 : i64, scratch_operands = 0 : i64, tpu.core_type = #tpu.core_type<tc>, window_params = [{transform_indices = @transform_0, window_bounds = array<i64: 32, 4>}, {pipeline_mode = #tpu.pipeline_mode<synchronous>, transform_indices = @transform_1, window_bounds = array<i64: 4, 128>}, {pipeline_mode = #tpu.pipeline_mode<synchronous>, transform_indices = @transform_2, window_bounds = array<i64: 1, 128>}, {pipeline_mode = #tpu.pipeline_mode<synchronous>, transform_indices = @transform_3, window_bounds = array<i64: 128, 1>}, {pipeline_mode = #tpu.pipeline_mode<synchronous>, transform_indices = @transform_4, window_bounds = array<i64: 1, 1>}, {transform_indices = @transform_5, window_bounds = array<i64: 32, 1>}]} {
    %c0 = arith.constant 0 : index
    %c0_0 = arith.constant 0 : index
    %0 = vector.load %arg1[%c0, %c0_0] : memref<32x4xf32, #tpu.memory_space<vmem>>, vector<32x4xf32>
    %1 = vector.extract_strided_slice %0 {offsets = [0, 0], sizes = [32, 1], strides = [1, 1]} : vector<32x4xf32> to vector<32x1xf32>
    %c0_1 = arith.constant 0 : index
    %c0_2 = arith.constant 0 : index
    %2 = vector.load %arg2[%c0_1, %c0_2] : memref<4x128xf32, #tpu.memory_space<vmem>>, vector<1x128xf32>
    %3 = vector.broadcast %1 : vector<32x1xf32> to vector<32x128xf32>
    %4 = vector.broadcast %2 : vector<1x128xf32> to vector<32x128xf32>
    %5 = arith.mulf %3, %4 : vector<32x128xf32>
    %c0_3 = arith.constant 0 : index
    %c0_4 = arith.constant 0 : index
    %6 = vector.load %arg3[%c0_3, %c0_4] : memref<1x128xf32, #tpu.memory_space<vmem>>, vector<1x128xf32>
    %7 = vector.broadcast %6 : vector<1x128xf32> to vector<32x128xf32>
    %8 = arith.addf %5, %7 : vector<32x128xf32>
    %9 = vector.extract_strided_slice %0 {offsets = [0, 1], sizes = [32, 1], strides = [1, 1]} : vector<32x4xf32> to vector<32x1xf32>
    %c1 = arith.constant 1 : index
    %c0_5 = arith.constant 0 : index
    %10 = vector.load %arg2[%c1, %c0_5] : memref<4x128xf32, #tpu.memory_space<vmem>>, vector<1x128xf32>
    %11 = vector.broadcast %9 : vector<32x1xf32> to vector<32x128xf32>
    %12 = vector.broadcast %10 : vector<1x128xf32> to vector<32x128xf32>
    %13 = arith.mulf %11, %12 : vector<32x128xf32>
    %14 = arith.addf %8, %13 : vector<32x128xf32>
    %15 = vector.extract_strided_slice %0 {offsets = [0, 2], sizes = [32, 1], strides = [1, 1]} : vector<32x4xf32> to vector<32x1xf32>
    %c2 = arith.constant 2 : index
    %c0_6 = arith.constant 0 : index
    %16 = vector.load %arg2[%c2, %c0_6] : memref<4x128xf32, #tpu.memory_space<vmem>>, vector<1x128xf32>
    %17 = vector.broadcast %15 : vector<32x1xf32> to vector<32x128xf32>
    %18 = vector.broadcast %16 : vector<1x128xf32> to vector<32x128xf32>
    %19 = arith.mulf %17, %18 : vector<32x128xf32>
    %20 = arith.addf %14, %19 : vector<32x128xf32>
    %21 = vector.extract_strided_slice %0 {offsets = [0, 3], sizes = [32, 1], strides = [1, 1]} : vector<32x4xf32> to vector<32x1xf32>
    %c3 = arith.constant 3 : index
    %c0_7 = arith.constant 0 : index
    %22 = vector.load %arg2[%c3, %c0_7] : memref<4x128xf32, #tpu.memory_space<vmem>>, vector<1x128xf32>
    %23 = vector.broadcast %21 : vector<32x1xf32> to vector<32x128xf32>
    %24 = vector.broadcast %22 : vector<1x128xf32> to vector<32x128xf32>
    %25 = arith.mulf %23, %24 : vector<32x128xf32>
    %26 = arith.addf %20, %25 : vector<32x128xf32>
    %cst = arith.constant 0.000000e+00 : f32
    %27 = vector.broadcast %cst : f32 to vector<32x128xf32>
    %28 = arith.maximumf %26, %27 : vector<32x128xf32>
    %c0_8 = arith.constant 0 : index
    %c0_9 = arith.constant 0 : index
    %29 = vector.load %arg4[%c0_8, %c0_9] : memref<128x1xf32, #tpu.memory_space<vmem>>, vector<128x1xf32>
    %cst_10 = arith.constant dense<0.000000e+00> : vector<32x1xf32>
    %30 = tpu.matmul %28, %29, %cst_10 {dimension_numbers = #tpu.dot_dimension_numbers<[1], [0], [0], [1], [0, 0, 1, 1], [], []>} : vector<32x128xf32>, vector<128x1xf32>, vector<32x1xf32> -> vector<32x1xf32>
    %c0_11 = arith.constant 0 : index
    %c0_12 = arith.constant 0 : index
    %31 = vector.load %arg5[%c0_11, %c0_12] : memref<1x1xf32, #tpu.memory_space<vmem>>, vector<1x1xf32>
    %32 = vector.broadcast %31 : vector<1x1xf32> to vector<32x1xf32>
    %33 = arith.addf %30, %32 : vector<32x1xf32>
    %c0_13 = arith.constant 0 : index
    %c0_14 = arith.constant 0 : index
    %34 = vector.load %arg6[%c0_13, %c0_14] : memref<32x1xf32, #tpu.memory_space<vmem>>, vector<32x1xf32>
    tpu.vector_store %arg6[%c0_13, %c0_14], %33 {strides = array<i32>} : memref<32x1xf32, #tpu.memory_space<vmem>>, vector<32x1xf32>,
    return
  }
  func.func @transform_0(%arg0: i32) -> (i32, i32) {
    %c0_i32 = arith.constant 0 : i32
    %c0_i32_0 = arith.constant 0 : i32
    return %arg0, %c0_i32 : i32, i32
  }
  func.func @transform_1(%arg0: i32) -> (i32, i32) {
    %c0_i32 = arith.constant 0 : i32
    %c0_i32_0 = arith.constant 0 : i32
    %c0_i32_1 = arith.constant 0 : i32
    return %c0_i32, %c0_i32_0 : i32, i32
  }
  func.func @transform_2(%arg0: i32) -> (i32, i32) {
    %c0_i32 = arith.constant 0 : i32
    %c0_i32_0 = arith.constant 0 : i32
    %c0_i32_1 = arith.constant 0 : i32
    return %c0_i32, %c0_i32_0 : i32, i32
  }
  func.func @transform_3(%arg0: i32) -> (i32, i32) {
    %c0_i32 = arith.constant 0 : i32
    %c0_i32_0 = arith.constant 0 : i32
    %c0_i32_1 = arith.constant 0 : i32
    return %c0_i32, %c0_i32_0 : i32, i32
  }
  func.func @transform_4(%arg0: i32) -> (i32, i32) {
    %c0_i32 = arith.constant 0 : i32
    %c0_i32_0 = arith.constant 0 : i32
    %c0_i32_1 = arith.constant 0 : i32
    return %c0_i32, %c0_i32_0 : i32, i32
  }
  func.func @transform_5(%arg0: i32) -> (i32, i32) {
    %c0_i32 = arith.constant 0 : i32
    %c0_i32_0 = arith.constant 0 : i32
    return %arg0, %c0_i32 : i32, i32
  }
}

</mosaic_0001>

<llo_original>
// kernel: net_forward.1
$region0: #{net_forward.1}
  #allocation0 [shape = 'u32[]', space=smem, size = 0x4, offset = 0x4, fixed_abs, tag = 'smem constant byte address 0x4 - core index']
  #allocation1 [shape = 'u32[144,128]{1,0:T(1,128)}', space=vmem, size = 0x12000, scoped, tag = 'internal scratch']
  #allocation2 [shape = 'f32[1,1]{1,0:T(1,128)S(1)}', space=vmem, size = 0x200, scoped, tag = 'scoped memory for net_forward.1']
  %s0 = inlined_call_operand.vmem [shape: f32[64,4], index: 0, kind: input, shape index: {}]
  %s1 = inlined_call_operand.vmem [shape: f32[4,128], index: 1, kind: input, shape index: {}]
  %s2 = inlined_call_operand.vmem [shape: f32[1,128], index: 2, kind: input, shape index: {}]
  %s3 = inlined_call_operand.vmem [shape: f32[128,1], index: 3, kind: input, shape index: {}]
  %s4 = inlined_call_operand.<no memory space> [shape: f32[1,1], index: 4, kind: input, shape index: {}]
  %s5 = inlined_call_operand.vmem [shape: f32[64,1], index: 5, kind: output, shape index: {}]
  %s6 = sld [smem:[#allocation0]]
  $region53: #{net_forward.1} parent=0
    _
  %s8 = ssub.s32 1, %s6
  %s9 = scalar_select 0, %s8, %s6
  %v10 = vstv %s4
  %11 = vst [vmem:[#allocation2] sm:$0x1] %v10
  loop: start=0, step=1, limit=4
  $region2: #{net_forward.1} parent=0 // loop_pre_header
    _
  $region3: #{net_forward.1} parent=0 // loop_header
    %s13 = sphi 0, %s17
    %p14 = scmp.ge.s32.totalorder %s13, 4
    %s23 = sphi 0, %s25
    %s26 = sphi 0, %s23
    %s27 = sphi 0, %s26
    %s43 = sphi 0, %s27
    %s47 = sphi 0, %s47
    %s49 = sphi 0, %s47
    %s50 = sphi 0, %s49
    %s64 = sphi 0, %s50
    %s68 = sphi 0, %s68
    %s70 = sphi 0, %s68
    %s71 = sphi 0, %s70
    %s85 = sphi 0, %s71
    %s89 = sphi 0, %s89
    %s91 = sphi 0, %s89
    %s92 = sphi 0, %s91
    %s106 = sphi 0, %s92
    %s110 = sphi 0, %s110
    %s112 = sphi 0, %s110
    %s113 = sphi 0, %s112
    %s127 = sphi 0, %s113
    %s133 = sphi 0, %s135
    %s136 = sphi 0, %s133
    %s137 = sphi 0, %s136
    %s153 = sphi 0, %s137
  $region4: #{net_forward.1} parent=0 // loop_header_branch
    %16 = sbr.rel (%p14) target = $region8
  $region5: #{net_forward.1} parent=0 // loop_body
    %s18 = ssub.s32 %s13, 1
    %s19 = ssub.s32 %s13, 2
    %s20 = sadd.s32 %s13, 1
    %s21 = ssub.s32 %s13, %s20
    %p22 = scmp.eq.s32.totalorder %s21, 0
    %s24 = sadd.s32 %s23, 1
    %s25 = scalar_select %p22, %s23, %s24
    %p28 = pneg %p22
    %p29 = scmp.eq.s32.totalorder %s13, 1
    %p30 = por %p28, %p29
    %p31 = scmp.ne.s32.totalorder %s23, %s26
    %p32 = scmp.eq.s32.totalorder %s13, 0
    %p33 = por %p31, %p32
    %p34 = scmp.ne.s32.totalorder %s23, %s26
    %p35 = scmp.eq.s32.totalorder %s18, 1
    %p36 = por %p34, %p35
    %p37 = scmp.ne.s32.totalorder %s26, %s27
    %p38 = scmp.eq.s32.totalorder %s18, 0
    %p39 = por %p37, %p38
    %p40 = scmp.ne.s32.totalorder %s26, %s27
    %p41 = scmp.eq.s32.totalorder %s19, 1
    %p42 = por %p40, %p41
    %p44 = scmp.ne.s32.totalorder %s27, %s43
    %p45 = scmp.eq.s32.totalorder %s19, 0
    %p46 = por %p44, %p45
    %s48 = sadd.s32 %s47, 1
    %p51 = scmp.eq.s32.totalorder %s13, 1
    %p52 = scmp.ne.s32.totalorder %s47, %s49
    %p53 = scmp.eq.s32.totalorder %s13, 0
    %p54 = por %p52, %p53
    %p55 = scmp.ne.s32.totalorder %s47, %s49
    %p56 = scmp.eq.s32.totalorder %s18, 1
    %p57 = por %p55, %p56
    %p58 = scmp.ne.s32.totalorder %s49, %s50
    %p59 = scmp.eq.s32.totalorder %s18, 0
    %p60 = por %p58, %p59
    %p61 = scmp.ne.s32.totalorder %s49, %s50
    %p62 = scmp.eq.s32.totalorder %s19, 1
    %p63 = por %p61, %p62
    %p65 = scmp.ne.s32.totalorder %s50, %s64
    %p66 = scmp.eq.s32.totalorder %s19, 0
    %p67 = por %p65, %p66
    %s69 = sadd.s32 %s68, 1
    %p72 = scmp.eq.s32.totalorder %s13, 1
    %p73 = scmp.ne.s32.totalorder %s68, %s70
    %p74 = scmp.eq.s32.totalorder %s13, 0
    %p75 = por %p73, %p74
    %p76 = scmp.ne.s32.totalorder %s68, %s70
    %p77 = scmp.eq.s32.totalorder %s18, 1
    %p78 = por %p76, %p77
    %p79 = scmp.ne.s32.totalorder %s70, %s71
    %p80 = scmp.eq.s32.totalorder %s18, 0
    %p81 = por %p79, %p80
    %p82 = scmp.ne.s32.totalorder %s70, %s71
    %p83 = scmp.eq.s32.totalorder %s19, 1
    %p84 = por %p82, %p83
    %p86 = scmp.ne.s32.totalorder %s71, %s85
    %p87 = scmp.eq.s32.totalorder %s19, 0
    %p88 = por %p86, %p87
    %s90 = sadd.s32 %s89, 1
    %p93 = scmp.eq.s32.totalorder %s13, 1
    %p94 = scmp.ne.s32.totalorder %s89, %s91
    %p95 = scmp.eq.s32.totalorder %s13, 0
    %p96 = por %p94, %p95
    %p97 = scmp.ne.s32.totalorder %s89, %s91
    %p98 = scmp.eq.s32.totalorder %s18, 1
    %p99 = por %p97, %p98
    %p100 = scmp.ne.s32.totalorder %s91, %s92
    %p101 = scmp.eq.s32.totalorder %s18, 0
    %p102 = por %p100, %p101
    %p103 = scmp.ne.s32.totalorder %s91, %s92
    %p104 = scmp.eq.s32.totalorder %s19, 1
    %p105 = por %p103, %p104
    %p107 = scmp.ne.s32.totalorder %s92, %s106
    %p108 = scmp.eq.s32.totalorder %s19, 0
    %p109 = por %p107, %p108
    %s111 = sadd.s32 %s110, 1
    %p114 = scmp.eq.s32.totalorder %s13, 1
    %p115 = scmp.ne.s32.totalorder %s110, %s112
    %p116 = scmp.eq.s32.totalorder %s13, 0
    %p117 = por %p115, %p116
    %p118 = scmp.ne.s32.totalorder %s110, %s112
    %p119 = scmp.eq.s32.totalorder %s18, 1
    %p120 = por %p118, %p119
    %p121 = scmp.ne.s32.totalorder %s112, %s113
    %p122 = scmp.eq.s32.totalorder %s18, 0
    %p123 = por %p121, %p122
    %p124 = scmp.ne.s32.totalorder %s112, %s113
    %p125 = scmp.eq.s32.totalorder %s19, 1
    %p126 = por %p124, %p125
    %p128 = scmp.ne.s32.totalorder %s113, %s127
    %p129 = scmp.eq.s32.totalorder %s19, 0
    %p130 = por %p128, %p129
    %s131 = ssub.s32 %s13, %s20
    %p132 = scmp.eq.s32.totalorder %s131, 0
    %s134 = sadd.s32 %s133, 1
    %s135 = scalar_select %p132, %s133, %s134
    %p138 = pneg %p132
    %p139 = scmp.eq.s32.totalorder %s13, 1
    %p140 = por %p138, %p139
    %p141 = scmp.ne.s32.totalorder %s133, %s136
    %p142 = scmp.eq.s32.totalorder %s13, 0
    %p143 = por %p141, %p142
    %p144 = scmp.ne.s32.totalorder %s133, %s136
    %p145 = scmp.eq.s32.totalorder %s18, 1
    %p146 = por %p144, %p145
    %p147 = scmp.ne.s32.totalorder %s136, %s137
    %p148 = scmp.eq.s32.totalorder %s18, 0
    %p149 = por %p147, %p148
    %p150 = scmp.ne.s32.totalorder %s136, %s137
    %p151 = scmp.eq.s32.totalorder %s19, 1
    %p152 = por %p150, %p151
    %p154 = scmp.ne.s32.totalorder %s137, %s153
    %p155 = scmp.eq.s32.totalorder %s19, 0
    %p156 = por %p154, %p155
    %p157 = scmp.le.s32.totalorder 1, %s13
    %p158 = scmp.lt.s32.totalorder %s13, 3
    %p159 = pnand %p157, %p158
    %p160 = pneg %p159
    // Predicated region
    $region9: #{net_forward.1} parent=5 // pred_check
      _
    $region10: #{net_forward.1} parent=5 // pred_check_branch
      %162 = sbr.rel (%p159) target = $region12
    $region11: #{net_forward.1} parent=5 // pred_region
      %s163 = ssub.s32 %s13, 1
      // Predicated region
      $region13: #{net_forward.1} parent=11 // pred_check
        %p164 = pneg %p60
      $region14: #{net_forward.1} parent=11 // pred_check_branch
        %166 = sbr.rel (%p164) target = $region16
      $region15: #{net_forward.1} parent=11 // pred_region
        _
      $region16: #{net_forward.1} parent=11 // pred_fallthru
        _
      // Predicated region
      $region17: #{net_forward.1} parent=11 // pred_check
        %p167 = pneg %p81
      $region18: #{net_forward.1} parent=11 // pred_check_branch
        %169 = sbr.rel (%p167) target = $region20
      $region19: #{net_forward.1} parent=11 // pred_region
        _
      $region20: #{net_forward.1} parent=11 // pred_fallthru
        _
      // Predicated region
      $region21: #{net_forward.1} parent=11 // pred_check
        %p170 = pneg %p102
      $region22: #{net_forward.1} parent=11 // pred_check_branch
        %172 = sbr.rel (%p170) target = $region24
      $region23: #{net_forward.1} parent=11 // pred_region
        _
      $region24: #{net_forward.1} parent=11 // pred_fallthru
        _
      // Predicated region
      $region25: #{net_forward.1} parent=11 // pred_check
        %p173 = pneg %p123
      $region26: #{net_forward.1} parent=11 // pred_check_branch
        %175 = sbr.rel (%p173) target = $region28
      $region27: #{net_forward.1} parent=11 // pred_region
        _
      $region28: #{net_forward.1} parent=11 // pred_fallthru
        _
    $region12: #{net_forward.1} parent=5 // pred_fallthru
      _
    %p176 = scmp.lt.s32.totalorder %s13, 2
    // Predicated region
    $region29: #{net_forward.1} parent=5 // pred_check
      %p177 = pneg %p176
    $region30: #{net_forward.1} parent=5 // pred_check_branch
      %179 = sbr.rel (%p177) target = $region32
    $region31: #{net_forward.1} parent=5 // pred_region
      // Predicated region
      $region33: #{net_forward.1} parent=31 // pred_check
        %p180 = pneg %p33
      $region34: #{net_forward.1} parent=31 // pred_check_branch
        %182 = sbr.rel (%p180) target = $region36
      $region35: #{net_forward.1} parent=31 // pred_region
        %s183 = smul.u32 4, %s13
        %p184 = scmp.lt.s32.totalorder %s183, 7
        %s185 = scalar_select %p184, %s183, 7
        %s186 = smul.addr %s185, 8
        %s187 = scalar_lea.vmem %s0, %s186
        %s188 = smul.u32 4, %s13
      $region36: #{net_forward.1} parent=31 // pred_fallthru
        _
    $region32: #{net_forward.1} parent=5 // pred_fallthru
      _
    %p189 = scmp.le.s32.totalorder 1, %s13
    %p190 = scmp.lt.s32.totalorder %s13, 3
    %p191 = pnand %p189, %p190
    %p192 = pneg %p191
    // Predicated region
    $region37: #{net_forward.1} parent=5 // pred_check
      _
    $region38: #{net_forward.1} parent=5 // pred_check_branch
      %194 = sbr.rel (%p191) target = $region40
    $region39: #{net_forward.1} parent=5 // pred_region
      %s195 = ssub.s32 %s13, 1
      %s196 = smul.u32 4, %s18
      %p197 = scmp.lt.s32.totalorder %s196, 7
      %s198 = scalar_select %p197, %s196, 7
      %s199 = smul.addr %s198, 8
      %s200 = scalar_lea.vmem %s0, %s199
      %p201 = pneg %p39
      %p202 = pneg %p36
      %p203 = pneg %p60
      %p204 = pneg %p57
      %p205 = pneg %p81
      %p206 = pneg %p78
      %p207 = pneg %p102
      %p208 = pneg %p99
      %p209 = pneg %p123
      %p210 = pneg %p120
      %p211 = pneg %p149
      %p212 = pneg %p146
      %s213 = smul.u32 4, %s18
      %p214 = scmp.lt.s32.totalorder %s213, 7
      %s215 = scalar_select %p214, %s213, 7
      %s216 = smul.addr %s215, 8
      %s217 = scalar_lea.vmem %s5, %s216
      %s218 = smul.u32 4, %s18
      %p219 = scmp.lt.s32.totalorder %s218, 7
      %s220 = scalar_select %p219, %s218, 7
      %s221 = smul.addr %s220, 8
      %s222 = scalar_lea.vmem %s0, %s221
      %s223 = smul.u32 4, %s18
      %s224 = smul.u32 4, %s18
      %p225 = scmp.lt.s32.totalorder %s224, 7
      %s226 = scalar_select %p225, %s224, 7
      %s227 = smul.addr %s226, 8
      %s228 = scalar_lea.vmem %s5, %s227
      %s229 = smul.u32 4, %s18
      %v230 = vld [vmem:[%s222] sm:$0xff]
      %v231 = vld [vmem:[%s222 + $0x8] sm:$0xff]
      %v232 = vld [vmem:[%s222 + $0x10] sm:$0xff]
      %v233 = vld [vmem:[%s222 + $0x18] sm:$0xff]
      %v234 = vld [vmem:[%s1] sm:$0x1]
      %236 = vset.pattern.permute.xlu0 0
      %237 = vperm.xlu0 %236, %v230
      %v238 = vpop.permute.xlu0 %237
      %241 = vset.pattern.permute.xlu0 0
      %242 = vperm.xlu0 %241, %v231
      %v243 = vpop.permute.xlu0 %242
      %246 = vset.pattern.permute.xlu0 0
      %247 = vperm.xlu0 %246, %v232
      %v248 = vpop.permute.xlu0 %247
      %251 = vset.pattern.permute.xlu0 0
      %252 = vperm.xlu0 %251, %v233
      %v253 = vpop.permute.xlu0 %252
      %v255 = vlaneseq
      %v256 = vshrl.u32 %v255, 7
      %v257 = vsub.s32 0, %v256
      %v258 = vrot.slane %v234, %v257
      %v259 = vmul.f32 %v238, %v258
      %v260 = vmul.f32 %v243, %v258
      %v261 = vmul.f32 %v248, %v258
      %v262 = vmul.f32 %v253, %v258
      %v263 = vld [vmem:[%s2] sm:$0x1]
      %v265 = vlaneseq
      %v266 = vshrl.u32 %v265, 7
      %v267 = vsub.s32 0, %v266
      %v268 = vrot.slane %v263, %v267
      %v270 = vadd.f32 %v259, %v268
      %v271 = vadd.f32 %v260, %v268
      %v272 = vadd.f32 %v261, %v268
      %v273 = vadd.f32 %v262, %v268
      %v274 = vld [vmem:[%s1 + $0x1] sm:$0x1]
      %275 = vset.pattern.permute.xlu0 1
      %276 = vperm.xlu0 %275, %v230
      %v277 = vpop.permute.xlu0 %276
      %279 = vset.pattern.permute.xlu0 1
      %280 = vperm.xlu0 %279, %v231
      %v281 = vpop.permute.xlu0 %280
      %283 = vset.pattern.permute.xlu0 1
      %284 = vperm.xlu0 %283, %v232
      %v285 = vpop.permute.xlu0 %284
      %287 = vset.pattern.permute.xlu0 1
      %288 = vperm.xlu0 %287, %v233
      %v289 = vpop.permute.xlu0 %288
      %v291 = vlaneseq
      %v292 = vshrl.u32 %v291, 7
      %v293 = vsub.s32 0, %v292
      %v294 = vrot.slane %v274, %v293
      %v295 = vmul.f32 %v277, %v294
      %v296 = vmul.f32 %v281, %v294
      %v297 = vmul.f32 %v285, %v294
      %v298 = vmul.f32 %v289, %v294
      %v299 = vadd.f32 %v270, %v295
      %v300 = vadd.f32 %v271, %v296
      %v301 = vadd.f32 %v272, %v297
      %v302 = vadd.f32 %v273, %v298
      %v303 = vld [vmem:[%s1 + $0x2] sm:$0x1]
      %304 = vset.pattern.permute.xlu0 2
      %305 = vperm.xlu0 %304, %v230
      %v306 = vpop.permute.xlu0 %305
      %308 = vset.pattern.permute.xlu0 2
      %309 = vperm.xlu0 %308, %v231
      %v310 = vpop.permute.xlu0 %309
      %312 = vset.pattern.permute.xlu0 2
      %313 = vperm.xlu0 %312, %v232
      %v314 = vpop.permute.xlu0 %313
      %316 = vset.pattern.permute.xlu0 2
      %317 = vperm.xlu0 %316, %v233
      %v318 = vpop.permute.xlu0 %317
      %v320 = vlaneseq
      %v321 = vshrl.u32 %v320, 7
      %v322 = vsub.s32 0, %v321
      %v323 = vrot.slane %v303, %v322
      %v324 = vmul.f32 %v306, %v323
      %v325 = vmul.f32 %v310, %v323
      %v326 = vmul.f32 %v314, %v323
      %v327 = vmul.f32 %v318, %v323
      %v328 = vadd.f32 %v299, %v324
      %v329 = vadd.f32 %v300, %v325
      %v330 = vadd.f32 %v301, %v326
      %v331 = vadd.f32 %v302, %v327
      %v332 = vld [vmem:[%s1 + $0x3] sm:$0x1]
      %333 = vset.pattern.permute.xlu0 3
      %334 = vperm.xlu0 %333, %v230
      %v335 = vpop.permute.xlu0 %334
      %337 = vset.pattern.permute.xlu0 3
      %338 = vperm.xlu0 %337, %v231
      %v339 = vpop.permute.xlu0 %338
      %341 = vset.pattern.permute.xlu0 3
      %342 = vperm.xlu0 %341, %v232
      %v343 = vpop.permute.xlu0 %342
      %345 = vset.pattern.permute.xlu0 3
      %346 = vperm.xlu0 %345, %v233
      %v347 = vpop.permute.xlu0 %346
      %v349 = vlaneseq
      %v350 = vshrl.u32 %v349, 7
      %v351 = vsub.s32 0, %v350
      %v352 = vrot.slane %v332, %v351
      %v353 = vmul.f32 %v335, %v352
      %v354 = vmul.f32 %v339, %v352
      %v355 = vmul.f32 %v343, %v352
      %v356 = vmul.f32 %v347, %v352
      %v357 = vadd.f32 %v328, %v353
      %v358 = vadd.f32 %v329, %v354
      %v359 = vadd.f32 %v330, %v355
      %v360 = vadd.f32 %v331, %v356
      %v361 = vmax.f32 %v357, 0.0
      %v362 = vmax.f32 %v358, 0.0
      %v363 = vmax.f32 %v359, 0.0
      %v364 = vmax.f32 %v360, 0.0
      %v365 = vld [vmem:[%s3] sm:$0xff]
      %v366 = vld [vmem:[%s3 + $0x8] sm:$0xff]
      %v367 = vld [vmem:[%s3 + $0x10] sm:$0xff]
      %v368 = vld [vmem:[%s3 + $0x18] sm:$0xff]
      %v369 = vld [vmem:[%s3 + $0x20] sm:$0xff]
      %v370 = vld [vmem:[%s3 + $0x28] sm:$0xff]
      %v371 = vld [vmem:[%s3 + $0x30] sm:$0xff]
      %v372 = vld [vmem:[%s3 + $0x38] sm:$0xff]
      %v373 = vld [vmem:[%s3 + $0x40] sm:$0xff]
      %v374 = vld [vmem:[%s3 + $0x48] sm:$0xff]
      %v375 = vld [vmem:[%s3 + $0x50] sm:$0xff]
      %v376 = vld [vmem:[%s3 + $0x58] sm:$0xff]
      %v377 = vld [vmem:[%s3 + $0x60] sm:$0xff]
      %v378 = vld [vmem:[%s3 + $0x68] sm:$0xff]
      %v379 = vld [vmem:[%s3 + $0x70] sm:$0xff]
      %v380 = vld [vmem:[%s3 + $0x78] sm:$0xff]
      %v381 = vld [vmem:[#allocation2] sm:$0x1]
      %v383 = vlaneseq
      %v384 = vshrl.u32 %v383, 7
      %v385 = vsub.s32 0, %v384
      %v386 = vrot.slane %v381, %v385
      %388 = vmatprep.subr.mxu0 0.0
      %389 = vmatpush1.msra.mxu0 %v365
      %390 = vmatprep.subr.mxu0 0.0
      %391 = vmatpush1.msra.mxu0 %v366
      %392 = vmatprep.subr.mxu0 0.0
      %393 = vmatpush1.msra.mxu0 %v367
      %394 = vmatprep.subr.mxu0 0.0
      %395 = vmatpush1.msra.mxu0 %v368
      %396 = vmatprep.subr.mxu0 0.0
      %397 = vmatpush1.msra.mxu0 %v369
      %398 = vmatprep.subr.mxu0 0.0
      %399 = vmatpush1.msra.mxu0 %v370
      %400 = vmatprep.subr.mxu0 0.0
      %401 = vmatpush1.msra.mxu0 %v371
      %402 = vmatprep.subr.mxu0 0.0
      %403 = vmatpush1.msra.mxu0 %v372
      %404 = vmatprep.subr.mxu0 0.0
      %405 = vmatpush1.msra.mxu0 %v373
      %406 = vmatprep.subr.mxu0 0.0
      %407 = vmatpush1.msra.mxu0 %v374
      %408 = vmatprep.subr.mxu0 0.0
      %409 = vmatpush1.msra.mxu0 %v375
      %410 = vmatprep.subr.mxu0 0.0
      %411 = vmatpush1.msra.mxu0 %v376
      %412 = vmatprep.subr.mxu0 0.0
      %413 = vmatpush1.msra.mxu0 %v377
      %414 = vmatprep.subr.mxu0 0.0
      %415 = vmatpush1.msra.mxu0 %v378
      %416 = vmatprep.subr.mxu0 0.0
      %417 = vmatpush1.msra.mxu0 %v379
      %418 = vmatprep.subr.mxu0 0.0
      %419 = vmatpush1.msra.mxu0 %v380
      %420 = vmatprep.subr.mxu0 0.0
      %421 = vmatpush1.msra.mxu0 0.0
      %422 = vmatprep.subr.mxu0 0.0
      %423 = vmatpush1.msra.mxu0 0.0
      %424 = vmatprep.subr.mxu0 0.0
      %425 = vmatpush1.msra.mxu0 0.0
      %426 = vmatprep.subr.mxu0 0.0
      %427 = vmatpush1.msra.mxu0 0.0
      %428 = vmatprep.subr.mxu0 0.0
      %429 = vmatpush1.msra.mxu0 0.0
      %430 = vmatprep.subr.mxu0 0.0
      %431 = vmatpush1.msra.mxu0 0.0
      %432 = vmatprep.subr.mxu0 0.0
      %433 = vmatpush1.msra.mxu0 0.0
      %434 = vmatprep.subr.mxu0 0.0
      %435 = vmatpush1.msra.mxu0 0.0
      %436 = vmatprep.subr.mxu0 0.0
      %437 = vmatpush1.msra.mxu0 0.0
      %438 = vmatprep.subr.mxu0 0.0
      %439 = vmatpush1.msra.mxu0 0.0
      %440 = vmatprep.subr.mxu0 0.0
      %441 = vmatpush1.msra.mxu0 0.0
      %442 = vmatprep.subr.mxu0 0.0
      %443 = vmatpush1.msra.mxu0 0.0
      %444 = vmatprep.subr.mxu0 0.0
      %445 = vmatpush1.msra.mxu0 0.0
      %446 = vmatprep.subr.mxu0 0.0
      %447 = vmatpush1.msra.mxu0 0.0
      %448 = vmatprep.subr.mxu0 0.0
      %449 = vmatpush1.msra.mxu0 0.0
      %450 = vmatprep.subr.mxu0 0.0
      %451 = vmatpush1.msra.mxu0 0.0
      %452 = vmatprep.mubr.f32.mxu0 0.0
      %453 = vmatmul.mubr.f32.gmra.mrb[0].mxu0 %v361
      %v454 = vpop.f32.mrb[0].mxu0
      %v455 = vadd.f32 %v386, %v454
      %v456 = vpop.f32.mrb[0].mxu0
      %457 = vmatprep.mubr.f32.mxu0 0.0
      %458 = vmatmul.mubr.f32.gmra.mrb[0].mxu0 %v362
      %v459 = vpop.f32.mrb[0].mxu0
      %v460 = vadd.f32 %v386, %v459
      %v461 = vpop.f32.mrb[0].mxu0
      %462 = vmatprep.mubr.f32.mxu0 0.0
      %463 = vmatmul.mubr.f32.gmra.mrb[0].mxu0 %v363
      %v464 = vpop.f32.mrb[0].mxu0
      %v465 = vadd.f32 %v386, %v464
      %v466 = vpop.f32.mrb[0].mxu0
      %467 = vmatprep.mubr.f32.mxu0 0.0
      %468 = vmatmul.mubr.f32.gmra.mrb[0].mxu0 %v364
      %v469 = vpop.f32.mrb[0].mxu0
      %v470 = vadd.f32 %v386, %v469
      %v471 = vpop.f32.mrb[0].mxu0
      %472 = vdwg.mxu0
      %vm473 = vcmask 7168
      %474 = vst.msk [vmem:[%s228] sm:$0xff] %vm473, %v455
      %475 = vst.msk [vmem:[%s228 + $0x8] sm:$0xff] %vm473, %v460
      %476 = vst.msk [vmem:[%s228 + $0x10] sm:$0xff] %vm473, %v465
      %477 = vst.msk [vmem:[%s228 + $0x18] sm:$0xff] %vm473, %v470
      %s478 = smul.u32 4, %s18
      %p479 = scmp.lt.s32.totalorder %s478, 7
      %s480 = scalar_select %p479, %s478, 7
      %s481 = smul.addr %s480, 8
      %s482 = scalar_lea.vmem %s5, %s481
      // Predicated region
      $region41: #{net_forward.1} parent=39 // pred_check
        %p483 = pneg %p146
      $region42: #{net_forward.1} parent=39 // pred_check_branch
        %485 = sbr.rel (%p483) target = $region44
      $region43: #{net_forward.1} parent=39 // pred_region
        %s486 = smul.u32 4, %s18
      $region44: #{net_forward.1} parent=39 // pred_fallthru
        _
    $region40: #{net_forward.1} parent=5 // pred_fallthru
      _
    %p487 = scmp.le.s32.totalorder 2, %s13
    // Predicated region
    $region45: #{net_forward.1} parent=5 // pred_check
      %p488 = pneg %p487
    $region46: #{net_forward.1} parent=5 // pred_check_branch
      %490 = sbr.rel (%p488) target = $region48
    $region47: #{net_forward.1} parent=5 // pred_region
      %s491 = ssub.s32 %s13, 2
      // Predicated region
      $region49: #{net_forward.1} parent=47 // pred_check
        %p492 = pneg %p152
      $region50: #{net_forward.1} parent=47 // pred_check_branch
        %494 = sbr.rel (%p492) target = $region52
      $region51: #{net_forward.1} parent=47 // pred_region
        %s495 = smul.u32 4, %s19
        %p496 = scmp.lt.s32.totalorder %s495, 7
        %s497 = scalar_select %p496, %s495, 7
        %s498 = smul.addr %s497, 8
        %s499 = scalar_lea.vmem %s5, %s498
      $region52: #{net_forward.1} parent=47 // pred_fallthru
        _
    $region48: #{net_forward.1} parent=5 // pred_fallthru
      _
  $region6: #{net_forward.1} parent=0 // loop_footer
    %s17 = sadd.s32 1, %s13
  $region7: #{net_forward.1} parent=0 // loop_footer_branch
    %12 = sbr.rel target = $region3
  $region8: #{net_forward.1} parent=0 // loop_exit
    _

// kernel: net_forward.1
$region0: #{net_forward.1}
  #allocation0 [shape = 'u32[]', space=smem, size = 0x4, offset = 0x4, fixed_abs, tag = 'smem constant byte address 0x4 - core index']
  #allocation1 [shape = 'u32[144,128]{1,0:T(1,128)}', space=vmem, size = 0x12000, scoped, tag = 'internal scratch']
  #allocation2 [shape = 'f32[1,1]{1,0:T(1,128)S(1)}', space=vmem, size = 0x200, scoped, tag = 'scoped memory for net_forward.1']
  %s0 = inlined_call_operand.vmem [shape: f32[64,4], index: 0, kind: input, shape index: {}]
  %s1 = inlined_call_operand.vmem [shape: f32[4,128], index: 1, kind: input, shape index: {}]
  %s2 = inlined_call_operand.vmem [shape: f32[1,128], index: 2, kind: input, shape index: {}]
  %s3 = inlined_call_operand.vmem [shape: f32[128,1], index: 3, kind: input, shape index: {}]
  %s4 = inlined_call_operand.<no memory space> [shape: f32[1,1], index: 4, kind: input, shape index: {}]
  %s5 = inlined_call_operand.vmem [shape: f32[64,1], index: 5, kind: output, shape index: {}]
  %s6 = sld [smem:[#allocation0]]
  $region53: #{net_forward.1} parent=0
    _
  %s8 = ssub.s32 1, %s6
  %s9 = scalar_select 0, %s8, %s6
  %v10 = vstv %s4
  %11 = vst [vmem:[#allocation2] sm:$0x1] %v10
  loop: start=0, step=1, limit=4
  $region2: #{net_forward.1} parent=0 // loop_pre_header
    _
  $region3: #{net_forward.1} parent=0 // loop_header
    %s13 = sphi 0, %s17
    %p14 = scmp.ge.s32.totalorder %s13, 4
    %s23 = sphi 0, %s25
    %s26 = sphi 0, %s23
    %s27 = sphi 0, %s26
    %s43 = sphi 0, %s27
    %s47 = sphi 0, %s47
    %s49 = sphi 0, %s47
    %s50 = sphi 0, %s49
    %s64 = sphi 0, %s50
    %s68 = sphi 0, %s68
    %s70 = sphi 0, %s68
    %s71 = sphi 0, %s70
    %s85 = sphi 0, %s71
    %s89 = sphi 0, %s89
    %s91 = sphi 0, %s89
    %s92 = sphi 0, %s91
    %s106 = sphi 0, %s92
    %s110 = sphi 0, %s110
    %s112 = sphi 0, %s110
    %s113 = sphi 0, %s112
    %s127 = sphi 0, %s113
    %s133 = sphi 0, %s135
    %s136 = sphi 0, %s133
    %s137 = sphi 0, %s136
    %s153 = sphi 0, %s137
  $region4: #{net_forward.1} parent=0 // loop_header_branch
    %16 = sbr.rel (%p14) target = $region8
  $region5: #{net_forward.1} parent=0 // loop_body
    %s18 = ssub.s32 %s13, 1
    %s19 = ssub.s32 %s13, 2
    %s20 = sadd.s32 %s13, 1
    %s21 = ssub.s32 %s13, %s20
    %p22 = scmp.eq.s32.totalorder %s21, 0
    %s24 = sadd.s32 %s23, 1
    %s25 = scalar_select %p22, %s23, %s24
    %p28 = pneg %p22
    %p29 = scmp.eq.s32.totalorder %s13, 1
    %p30 = por %p28, %p29
    %p31 = scmp.ne.s32.totalorder %s23, %s26
    %p32 = scmp.eq.s32.totalorder %s13, 0
    %p33 = por %p31, %p32
    %p34 = scmp.ne.s32.totalorder %s23, %s26
    %p35 = scmp.eq.s32.totalorder %s18, 1
    %p36 = por %p34, %p35
    %p37 = scmp.ne.s32.totalorder %s26, %s27
    %p38 = scmp.eq.s32.totalorder %s18, 0
    %p39 = por %p37, %p38
    %p40 = scmp.ne.s32.totalorder %s26, %s27
    %p41 = scmp.eq.s32.totalorder %s19, 1
    %p42 = por %p40, %p41
    %p44 = scmp.ne.s32.totalorder %s27, %s43
    %p45 = scmp.eq.s32.totalorder %s19, 0
    %p46 = por %p44, %p45
    %s48 = sadd.s32 %s47, 1
    %p51 = scmp.eq.s32.totalorder %s13, 1
    %p52 = scmp.ne.s32.totalorder %s47, %s49
    %p53 = scmp.eq.s32.totalorder %s13, 0
    %p54 = por %p52, %p53
    %p55 = scmp.ne.s32.totalorder %s47, %s49
    %p56 = scmp.eq.s32.totalorder %s18, 1
    %p57 = por %p55, %p56
    %p58 = scmp.ne.s32.totalorder %s49, %s50
    %p59 = scmp.eq.s32.totalorder %s18, 0
    %p60 = por %p58, %p59
    %p61 = scmp.ne.s32.totalorder %s49, %s50
    %p62 = scmp.eq.s32.totalorder %s19, 1
    %p63 = por %p61, %p62
    %p65 = scmp.ne.s32.totalorder %s50, %s64
    %p66 = scmp.eq.s32.totalorder %s19, 0
    %p67 = por %p65, %p66
    %s69 = sadd.s32 %s68, 1
    %p72 = scmp.eq.s32.totalorder %s13, 1
    %p73 = scmp.ne.s32.totalorder %s68, %s70
    %p74 = scmp.eq.s32.totalorder %s13, 0
    %p75 = por %p73, %p74
    %p76 = scmp.ne.s32.totalorder %s68, %s70
    %p77 = scmp.eq.s32.totalorder %s18, 1
    %p78 = por %p76, %p77
    %p79 = scmp.ne.s32.totalorder %s70, %s71
    %p80 = scmp.eq.s32.totalorder %s18, 0
    %p81 = por %p79, %p80
    %p82 = scmp.ne.s32.totalorder %s70, %s71
    %p83 = scmp.eq.s32.totalorder %s19, 1
    %p84 = por %p82, %p83
    %p86 = scmp.ne.s32.totalorder %s71, %s85
    %p87 = scmp.eq.s32.totalorder %s19, 0
    %p88 = por %p86, %p87
    %s90 = sadd.s32 %s89, 1
    %p93 = scmp.eq.s32.totalorder %s13, 1
    %p94 = scmp.ne.s32.totalorder %s89, %s91
    %p95 = scmp.eq.s32.totalorder %s13, 0
    %p96 = por %p94, %p95
    %p97 = scmp.ne.s32.totalorder %s89, %s91
    %p98 = scmp.eq.s32.totalorder %s18, 1
    %p99 = por %p97, %p98
    %p100 = scmp.ne.s32.totalorder %s91, %s92
    %p101 = scmp.eq.s32.totalorder %s18, 0
    %p102 = por %p100, %p101
    %p103 = scmp.ne.s32.totalorder %s91, %s92
    %p104 = scmp.eq.s32.totalorder %s19, 1
    %p105 = por %p103, %p104
    %p107 = scmp.ne.s32.totalorder %s92, %s106
    %p108 = scmp.eq.s32.totalorder %s19, 0
    %p109 = por %p107, %p108
    %s111 = sadd.s32 %s110, 1
    %p114 = scmp.eq.s32.totalorder %s13, 1
    %p115 = scmp.ne.s32.totalorder %s110, %s112
    %p116 = scmp.eq.s32.totalorder %s13, 0
    %p117 = por %p115, %p116
    %p118 = scmp.ne.s32.totalorder %s110, %s112
    %p119 = scmp.eq.s32.totalorder %s18, 1
    %p120 = por %p118, %p119
    %p121 = scmp.ne.s32.totalorder %s112, %s113
    %p122 = scmp.eq.s32.totalorder %s18, 0
    %p123 = por %p121, %p122
    %p124 = scmp.ne.s32.totalorder %s112, %s113
    %p125 = scmp.eq.s32.totalorder %s19, 1
    %p126 = por %p124, %p125
    %p128 = scmp.ne.s32.totalorder %s113, %s127
    %p129 = scmp.eq.s32.totalorder %s19, 0
    %p130 = por %p128, %p129
    %s131 = ssub.s32 %s13, %s20
    %p132 = scmp.eq.s32.totalorder %s131, 0
    %s134 = sadd.s32 %s133, 1
    %s135 = scalar_select %p132, %s133, %s134
    %p138 = pneg %p132
    %p139 = scmp.eq.s32.totalorder %s13, 1
    %p140 = por %p138, %p139
    %p141 = scmp.ne.s32.totalorder %s133, %s136
    %p142 = scmp.eq.s32.totalorder %s13, 0
    %p143 = por %p141, %p142
    %p144 = scmp.ne.s32.totalorder %s133, %s136
    %p145 = scmp.eq.s32.totalorder %s18, 1
    %p146 = por %p144, %p145
    %p147 = scmp.ne.s32.totalorder %s136, %s137
    %p148 = scmp.eq.s32.totalorder %s18, 0
    %p149 = por %p147, %p148
    %p150 = scmp.ne.s32.totalorder %s136, %s137
    %p151 = scmp.eq.s32.totalorder %s19, 1
    %p152 = por %p150, %p151
    %p154 = scmp.ne.s32.totalorder %s137, %s153
    %p155 = scmp.eq.s32.totalorder %s19, 0
    %p156 = por %p154, %p155
    %p157 = scmp.le.s32.totalorder 1, %s13
    %p158 = scmp.lt.s32.totalorder %s13, 3
    %p159 = pnand %p157, %p158
    %p160 = pneg %p159
    // Predicated region
    $region9: #{net_forward.1} parent=5 // pred_check
      _
    $region10: #{net_forward.1} parent=5 // pred_check_branch
      %162 = sbr.rel (%p159) target = $region12
    $region11: #{net_forward.1} parent=5 // pred_region
      %s163 = ssub.s32 %s13, 1
      // Predicated region
      $region13: #{net_forward.1} parent=11 // pred_check
        %p164 = pneg %p60
      $region14: #{net_forward.1} parent=11 // pred_check_branch
        %166 = sbr.rel (%p164) target = $region16
      $region15: #{net_forward.1} parent=11 // pred_region
        _
      $region16: #{net_forward.1} parent=11 // pred_fallthru
        _
      // Predicated region
      $region17: #{net_forward.1} parent=11 // pred_check
        %p167 = pneg %p81
      $region18: #{net_forward.1} parent=11 // pred_check_branch
        %169 = sbr.rel (%p167) target = $region20
      $region19: #{net_forward.1} parent=11 // pred_region
        _
      $region20: #{net_forward.1} parent=11 // pred_fallthru
        _
      // Predicated region
      $region21: #{net_forward.1} parent=11 // pred_check
        %p170 = pneg %p102
      $region22: #{net_forward.1} parent=11 // pred_check_branch
        %172 = sbr.rel (%p170) target = $region24
      $region23: #{net_forward.1} parent=11 // pred_region
        _
      $region24: #{net_forward.1} parent=11 // pred_fallthru
        _
      // Predicated region
      $region25: #{net_forward.1} parent=11 // pred_check
        %p173 = pneg %p123
      $region26: #{net_forward.1} parent=11 // pred_check_branch
        %175 = sbr.rel (%p173) target = $region28
      $region27: #{net_forward.1} parent=11 // pred_region
        _
      $region28: #{net_forward.1} parent=11 // pred_fallthru
        _
    $region12: #{net_forward.1} parent=5 // pred_fallthru
      _
    %p176 = scmp.lt.s32.totalorder %s13, 2
    // Predicated region
    $region29: #{net_forward.1} parent=5 // pred_check
      %p177 = pneg %p176
    $region30: #{net_forward.1} parent=5 // pred_check_branch
      %179 = sbr.rel (%p177) target = $region32
    $region31: #{net_forward.1} parent=5 // pred_region
      // Predicated region
      $region33: #{net_forward.1} parent=31 // pred_check
        %p180 = pneg %p33
      $region34: #{net_forward.1} parent=31 // pred_check_branch
        %182 = sbr.rel (%p180) target = $region36
      $region35: #{net_forward.1} parent=31 // pred_region
        %s183 = smul.u32 4, %s13
        %p184 = scmp.lt.s32.totalorder %s183, 7
        %s185 = scalar_select %p184, %s183, 7
        %s186 = smul.addr %s185, 8
        %s187 = scalar_lea.vmem %s0, %s186
        %s188 = smul.u32 4, %s13
      $region36: #{net_forward.1} parent=31 // pred_fallthru
        _
    $region32: #{net_forward.1} parent=5 // pred_fallthru
      _
    %p189 = scmp.le.s32.totalorder 1, %s13
    %p190 = scmp.lt.s32.totalorder %s13, 3
    %p191 = pnand %p189, %p190
    %p192 = pneg %p191
    // Predicated region
    $region37: #{net_forward.1} parent=5 // pred_check
      _
    $region38: #{net_forward.1} parent=5 // pred_check_branch
      %194 = sbr.rel (%p191) target = $region40
    $region39: #{net_forward.1} parent=5 // pred_region
      %s195 = ssub.s32 %s13, 1
      %s196 = smul.u32 4, %s18
      %p197 = scmp.lt.s32.totalorder %s196, 7
      %s198 = scalar_select %p197, %s196, 7
      %s199 = smul.addr %s198, 8
      %s200 = scalar_lea.vmem %s0, %s199
      %p201 = pneg %p39
      %p202 = pneg %p36
      %p203 = pneg %p60
      %p204 = pneg %p57
      %p205 = pneg %p81
      %p206 = pneg %p78
      %p207 = pneg %p102
      %p208 = pneg %p99
      %p209 = pneg %p123
      %p210 = pneg %p120
      %p211 = pneg %p149
      %p212 = pneg %p146
      %s213 = smul.u32 4, %s18
      %p214 = scmp.lt.s32.totalorder %s213, 7
      %s215 = scalar_select %p214, %s213, 7
      %s216 = smul.addr %s215, 8
      %s217 = scalar_lea.vmem %s5, %s216
      %s218 = smul.u32 4, %s18
      %p219 = scmp.lt.s32.totalorder %s218, 7
      %s220 = scalar_select %p219, %s218, 7
      %s221 = smul.addr %s220, 8
      %s222 = scalar_lea.vmem %s0, %s221
      %s223 = smul.u32 4, %s18
      %s224 = smul.u32 4, %s18
      %p225 = scmp.lt.s32.totalorder %s224, 7
      %s226 = scalar_select %p225, %s224, 7
      %s227 = smul.addr %s226, 8
      %s228 = scalar_lea.vmem %s5, %s227
      %s229 = smul.u32 4, %s18
      %v230 = vld [vmem:[%s222] sm:$0xff]
      %v231 = vld [vmem:[%s222 + $0x8] sm:$0xff]
      %v232 = vld [vmem:[%s222 + $0x10] sm:$0xff]
      %v233 = vld [vmem:[%s222 + $0x18] sm:$0xff]
      %v234 = vld [vmem:[%s1] sm:$0x1]
      %236 = vset.pattern.permute.xlu0 0
      %237 = vperm.xlu0 %236, %v230
      %v238 = vpop.permute.xlu0 %237
      %241 = vset.pattern.permute.xlu0 0
      %242 = vperm.xlu0 %241, %v231
      %v243 = vpop.permute.xlu0 %242
      %246 = vset.pattern.permute.xlu0 0
      %247 = vperm.xlu0 %246, %v232
      %v248 = vpop.permute.xlu0 %247
      %251 = vset.pattern.permute.xlu0 0
      %252 = vperm.xlu0 %251, %v233
      %v253 = vpop.permute.xlu0 %252
      %v255 = vlaneseq
      %v256 = vshrl.u32 %v255, 7
      %v257 = vsub.s32 0, %v256
      %v258 = vrot.slane %v234, %v257
      %v259 = vmul.f32 %v238, %v258
      %v260 = vmul.f32 %v243, %v258
      %v261 = vmul.f32 %v248, %v258
      %v262 = vmul.f32 %v253, %v258
      %v263 = vld [vmem:[%s2] sm:$0x1]
      %v265 = vlaneseq
      %v266 = vshrl.u32 %v265, 7
      %v267 = vsub.s32 0, %v266
      %v268 = vrot.slane %v263, %v267
      %v270 = vadd.f32 %v259, %v268
      %v271 = vadd.f32 %v260, %v268
      %v272 = vadd.f32 %v261, %v268
      %v273 = vadd.f32 %v262, %v268
      %v274 = vld [vmem:[%s1 + $0x1] sm:$0x1]
      %275 = vset.pattern.permute.xlu0 1
      %276 = vperm.xlu0 %275, %v230
      %v277 = vpop.permute.xlu0 %276
      %279 = vset.pattern.permute.xlu0 1
      %280 = vperm.xlu0 %279, %v231
      %v281 = vpop.permute.xlu0 %280
      %283 = vset.pattern.permute.xlu0 1
      %284 = vperm.xlu0 %283, %v232
      %v285 = vpop.permute.xlu0 %284
      %287 = vset.pattern.permute.xlu0 1
      %288 = vperm.xlu0 %287, %v233
      %v289 = vpop.permute.xlu0 %288
      %v291 = vlaneseq
      %v292 = vshrl.u32 %v291, 7
      %v293 = vsub.s32 0, %v292
      %v294 = vrot.slane %v274, %v293
      %v295 = vmul.f32 %v277, %v294
      %v296 = vmul.f32 %v281, %v294
      %v297 = vmul.f32 %v285, %v294
      %v298 = vmul.f32 %v289, %v294
      %v299 = vadd.f32 %v270, %v295
      %v300 = vadd.f32 %v271, %v296
      %v301 = vadd.f32 %v272, %v297
      %v302 = vadd.f32 %v273, %v298
      %v303 = vld [vmem:[%s1 + $0x2] sm:$0x1]
      %304 = vset.pattern.permute.xlu0 2
      %305 = vperm.xlu0 %304, %v230
      %v306 = vpop.permute.xlu0 %305
      %308 = vset.pattern.permute.xlu0 2
      %309 = vperm.xlu0 %308, %v231
      %v310 = vpop.permute.xlu0 %309
      %312 = vset.pattern.permute.xlu0 2
      %313 = vperm.xlu0 %312, %v232
      %v314 = vpop.permute.xlu0 %313
      %316 = vset.pattern.permute.xlu0 2
      %317 = vperm.xlu0 %316, %v233
      %v318 = vpop.permute.xlu0 %317
      %v320 = vlaneseq
      %v321 = vshrl.u32 %v320, 7
      %v322 = vsub.s32 0, %v321
      %v323 = vrot.slane %v303, %v322
      %v324 = vmul.f32 %v306, %v323
      %v325 = vmul.f32 %v310, %v323
      %v326 = vmul.f32 %v314, %v323
      %v327 = vmul.f32 %v318, %v323
      %v328 = vadd.f32 %v299, %v324
      %v329 = vadd.f32 %v300, %v325
      %v330 = vadd.f32 %v301, %v326
      %v331 = vadd.f32 %v302, %v327
      %v332 = vld [vmem:[%s1 + $0x3] sm:$0x1]
      %333 = vset.pattern.permute.xlu0 3
      %334 = vperm.xlu0 %333, %v230
      %v335 = vpop.permute.xlu0 %334
      %337 = vset.pattern.permute.xlu0 3
      %338 = vperm.xlu0 %337, %v231
      %v339 = vpop.permute.xlu0 %338
      %341 = vset.pattern.permute.xlu0 3
      %342 = vperm.xlu0 %341, %v232
      %v343 = vpop.permute.xlu0 %342
      %345 = vset.pattern.permute.xlu0 3
      %346 = vperm.xlu0 %345, %v233
      %v347 = vpop.permute.xlu0 %346
      %v349 = vlaneseq
      %v350 = vshrl.u32 %v349, 7
      %v351 = vsub.s32 0, %v350
      %v352 = vrot.slane %v332, %v351
      %v353 = vmul.f32 %v335, %v352
      %v354 = vmul.f32 %v339, %v352
      %v355 = vmul.f32 %v343, %v352
      %v356 = vmul.f32 %v347, %v352
      %v357 = vadd.f32 %v328, %v353
      %v358 = vadd.f32 %v329, %v354
      %v359 = vadd.f32 %v330, %v355
      %v360 = vadd.f32 %v331, %v356
      %v361 = vmax.f32 %v357, 0.0
      %v362 = vmax.f32 %v358, 0.0
      %v363 = vmax.f32 %v359, 0.0
      %v364 = vmax.f32 %v360, 0.0
      %v365 = vld [vmem:[%s3] sm:$0xff]
      %v366 = vld [vmem:[%s3 + $0x8] sm:$0xff]
      %v367 = vld [vmem:[%s3 + $0x10] sm:$0xff]
      %v368 = vld [vmem:[%s3 + $0x18] sm:$0xff]
      %v369 = vld [vmem:[%s3 + $0x20] sm:$0xff]
      %v370 = vld [vmem:[%s3 + $0x28] sm:$0xff]
      %v371 = vld [vmem:[%s3 + $0x30] sm:$0xff]
      %v372 = vld [vmem:[%s3 + $0x38] sm:$0xff]
      %v373 = vld [vmem:[%s3 + $0x40] sm:$0xff]
      %v374 = vld [vmem:[%s3 + $0x48] sm:$0xff]
      %v375 = vld [vmem:[%s3 + $0x50] sm:$0xff]
      %v376 = vld [vmem:[%s3 + $0x58] sm:$0xff]
      %v377 = vld [vmem:[%s3 + $0x60] sm:$0xff]
      %v378 = vld [vmem:[%s3 + $0x68] sm:$0xff]
      %v379 = vld [vmem:[%s3 + $0x70] sm:$0xff]
      %v380 = vld [vmem:[%s3 + $0x78] sm:$0xff]
      %v381 = vld [vmem:[#allocation2] sm:$0x1]
      %v383 = vlaneseq
      %v384 = vshrl.u32 %v383, 7
      %v385 = vsub.s32 0, %v384
      %v386 = vrot.slane %v381, %v385
      %388 = vmatprep.subr.mxu0 0.0
      %389 = vmatpush1.msra.mxu0 %v365
      %390 = vmatprep.subr.mxu0 0.0
      %391 = vmatpush1.msra.mxu0 %v366
      %392 = vmatprep.subr.mxu0 0.0
      %393 = vmatpush1.msra.mxu0 %v367
      %394 = vmatprep.subr.mxu0 0.0
      %395 = vmatpush1.msra.mxu0 %v368
      %396 = vmatprep.subr.mxu0 0.0
      %397 = vmatpush1.msra.mxu0 %v369
      %398 = vmatprep.subr.mxu0 0.0
      %399 = vmatpush1.msra.mxu0 %v370
      %400 = vmatprep.subr.mxu0 0.0
      %401 = vmatpush1.msra.mxu0 %v371
      %402 = vmatprep.subr.mxu0 0.0
      %403 = vmatpush1.msra.mxu0 %v372
      %404 = vmatprep.subr.mxu0 0.0
      %405 = vmatpush1.msra.mxu0 %v373
      %406 = vmatprep.subr.mxu0 0.0
      %407 = vmatpush1.msra.mxu0 %v374
      %408 = vmatprep.subr.mxu0 0.0
      %409 = vmatpush1.msra.mxu0 %v375
      %410 = vmatprep.subr.mxu0 0.0
      %411 = vmatpush1.msra.mxu0 %v376
      %412 = vmatprep.subr.mxu0 0.0
      %413 = vmatpush1.msra.mxu0 %v377
      %414 = vmatprep.subr.mxu0 0.0
      %415 = vmatpush1.msra.mxu0 %v378
      %416 = vmatprep.subr.mxu0 0.0
      %417 = vmatpush1.msra.mxu0 %v379
      %418 = vmatprep.subr.mxu0 0.0
      %419 = vmatpush1.msra.mxu0 %v380
      %420 = vmatprep.subr.mxu0 0.0
      %421 = vmatpush1.msra.mxu0 0.0
      %422 = vmatprep.subr.mxu0 0.0
      %423 = vmatpush1.msra.mxu0 0.0
      %424 = vmatprep.subr.mxu0 0.0
      %425 = vmatpush1.msra.mxu0 0.0
      %426 = vmatprep.subr.mxu0 0.0
      %427 = vmatpush1.msra.mxu0 0.0
      %428 = vmatprep.subr.mxu0 0.0
      %429 = vmatpush1.msra.mxu0 0.0
      %430 = vmatprep.subr.mxu0 0.0
      %431 = vmatpush1.msra.mxu0 0.0
      %432 = vmatprep.subr.mxu0 0.0
      %433 = vmatpush1.msra.mxu0 0.0
      %434 = vmatprep.subr.mxu0 0.0
      %435 = vmatpush1.msra.mxu0 0.0
      %436 = vmatprep.subr.mxu0 0.0
      %437 = vmatpush1.msra.mxu0 0.0
      %438 = vmatprep.subr.mxu0 0.0
      %439 = vmatpush1.msra.mxu0 0.0
      %440 = vmatprep.subr.mxu0 0.0
      %441 = vmatpush1.msra.mxu0 0.0
      %442 = vmatprep.subr.mxu0 0.0
      %443 = vmatpush1.msra.mxu0 0.0
      %444 = vmatprep.subr.mxu0 0.0
      %445 = vmatpush1.msra.mxu0 0.0
      %446 = vmatprep.subr.mxu0 0.0
      %447 = vmatpush1.msra.mxu0 0.0
      %448 = vmatprep.subr.mxu0 0.0
      %449 = vmatpush1.msra.mxu0 0.0
      %450 = vmatprep.subr.mxu0 0.0
      %451 = vmatpush1.msra.mxu0 0.0
      %452 = vmatprep.mubr.f32.mxu0 0.0
      %453 = vmatmul.mubr.f32.gmra.mrb[0].mxu0 %v361
      %v454 = vpop.f32.mrb[0].mxu0
      %v455 = vadd.f32 %v386, %v454
      %v456 = vpop.f32.mrb[0].mxu0
      %457 = vmatprep.mubr.f32.mxu0 0.0
      %458 = vmatmul.mubr.f32.gmra.mrb[0].mxu0 %v362
      %v459 = vpop.f32.mrb[0].mxu0
      %v460 = vadd.f32 %v386, %v459
      %v461 = vpop.f32.mrb[0].mxu0
      %462 = vmatprep.mubr.f32.mxu0 0.0
      %463 = vmatmul.mubr.f32.gmra.mrb[0].mxu0 %v363
      %v464 = vpop.f32.mrb[0].mxu0
      %v465 = vadd.f32 %v386, %v464
      %v466 = vpop.f32.mrb[0].mxu0
      %467 = vmatprep.mubr.f32.mxu0 0.0
      %468 = vmatmul.mubr.f32.gmra.mrb[0].mxu0 %v364
      %v469 = vpop.f32.mrb[0].mxu0
      %v470 = vadd.f32 %v386, %v469
      %v471 = vpop.f32.mrb[0].mxu0
      %472 = vdwg.mxu0
      %vm473 = vcmask 7168
      %474 = vst.msk [vmem:[%s228] sm:$0xff] %vm473, %v455
      %475 = vst.msk [vmem:[%s228 + $0x8] sm:$0xff] %vm473, %v460
      %476 = vst.msk [vmem:[%s228 + $0x10] sm:$0xff] %vm473, %v465
      %477 = vst.msk [vmem:[%s228 + $0x18] sm:$0xff] %vm473, %v470
      %s478 = smul.u32 4, %s18
      %p479 = scmp.lt.s32.totalorder %s478, 7
      %s480 = scalar_select %p479, %s478, 7
      %s481 = smul.addr %s480, 8
      %s482 = scalar_lea.vmem %s5, %s481
      // Predicated region
      $region41: #{net_forward.1} parent=39 // pred_check
        %p483 = pneg %p146
      $region42: #{net_forward.1} parent=39 // pred_check_branch
        %485 = sbr.rel (%p483) target = $region44
      $region43: #{net_forward.1} parent=39 // pred_region
        %s486 = smul.u32 4, %s18
      $region44: #{net_forward.1} parent=39 // pred_fallthru
        _
    $region40: #{net_forward.1} parent=5 // pred_fallthru
      _
    %p487 = scmp.le.s32.totalorder 2, %s13
    // Predicated region
    $region45: #{net_forward.1} parent=5 // pred_check
      %p488 = pneg %p487
    $region46: #{net_forward.1} parent=5 // pred_check_branch
      %490 = sbr.rel (%p488) target = $region48
    $region47: #{net_forward.1} parent=5 // pred_region
      %s491 = ssub.s32 %s13, 2
      // Predicated region
      $region49: #{net_forward.1} parent=47 // pred_check
        %p492 = pneg %p152
      $region50: #{net_forward.1} parent=47 // pred_check_branch
        %494 = sbr.rel (%p492) target = $region52
      $region51: #{net_forward.1} parent=47 // pred_region
        %s495 = smul.u32 4, %s19
        %p496 = scmp.lt.s32.totalorder %s495, 7
        %s497 = scalar_select %p496, %s495, 7
        %s498 = smul.addr %s497, 8
        %s499 = scalar_lea.vmem %s5, %s498
      $region52: #{net_forward.1} parent=47 // pred_fallthru
        _
    $region48: #{net_forward.1} parent=5 // pred_fallthru
      _
  $region6: #{net_forward.1} parent=0 // loop_footer
    %s17 = sadd.s32 1, %s13
  $region7: #{net_forward.1} parent=0 // loop_footer_branch
    %12 = sbr.rel target = $region3
  $region8: #{net_forward.1} parent=0 // loop_exit
    _

</llo_original>
